<compile_context>
chip_gen: v5e
topology: v5e:2x2
jax: 0.10.0
libtpu: 0.0.40
codegen_flags: <defaults>
</compile_context>

<pallas_src>
import functools

import jax
import jax.numpy as jnp
from jax import lax
from jax.experimental import pallas as pl
from jax.experimental.pallas import tpu as pltpu


def _round_up(x: int, m: int) -> int:
    return ((x + m - 1) // m) * m


# --------------------------------------------------------------------------
# Kernels.  x_ref: [tm, tk], w_ref: [tn, tk] (nn.Linear layout), o_ref: [tm, tn].
# Contraction is on axis 1 of both operands (transposed-RHS matmul on the MXU).
# --------------------------------------------------------------------------

_DOT_DIMS = (((1,), (1,)), ((), ()))


def _lm_head_kernel_single_k(x_ref, w_ref, o_ref, *, scale: float):
    acc = lax.dot_general(x_ref[...], w_ref[...],
                          dimension_numbers=_DOT_DIMS,
                          preferred_element_type=jnp.float32)
    o_ref[...] = (acc * scale).astype(o_ref.dtype)


def _lm_head_kernel_multi_k_inplace(x_ref, w_ref, o_ref, *, scale: float):
    # f32 output block is resident across the reduction axis: accumulate in place.
    @pl.when(pl.program_id(2) == 0)
    def _():
        o_ref[...] = jnp.zeros_like(o_ref)

    o_ref[...] += lax.dot_general(x_ref[...], w_ref[...],
                                  dimension_numbers=_DOT_DIMS,
                                  preferred_element_type=jnp.float32)

    @pl.when(pl.program_id(2) == pl.num_programs(2) - 1)
    def _():
        o_ref[...] = o_ref[...] * scale


def _lm_head_kernel_multi_k_scratch(x_ref, w_ref, o_ref, acc_ref, *, scale: float):
    @pl.when(pl.program_id(2) == 0)
    def _():
        acc_ref[...] = jnp.zeros_like(acc_ref)

    acc_ref[...] += lax.dot_general(x_ref[...], w_ref[...],
                                    dimension_numbers=_DOT_DIMS,
                                    preferred_element_type=jnp.float32)

    @pl.when(pl.program_id(2) == pl.num_programs(2) - 1)
    def _():
        o_ref[...] = (acc_ref[...] * scale).astype(o_ref.dtype)


# --------------------------------------------------------------------------
# Wrapper
# --------------------------------------------------------------------------

# Working-set budget for the double-buffered tiles — conservative enough to fit
# every generation (v7x has only 64 MiB physical VMEM per TensorCore).
_VMEM_WORKING_SET_BUDGET = 36 << 20
_VMEM_LIMIT_CAP = 48 << 20  # never request more scoped VMEM than this (v7x-safe)


def switch_lm_prediction_head(hidden_states, lm_head_weight, *,
                              compute_dtype=jnp.bfloat16,
                              tm: int | None = None,
                              tn: int | None = None,
                              tk: int | None = None):
    """Forward of SwitchLMPredictionHead.

    hidden_states : [B, S, H]   (d_model == H)
    lm_head_weight: [V, H]      (PyTorch nn.Linear weight layout, bias=False)
    compute_dtype : dtype fed to the MXU (default bf16; pass jnp.float32 for
                    bit-tight results).  Accumulation is always f32.
    returns       : [B, S, V]   in hidden_states.dtype
    """
    B, S, H = hidden_states.shape
    V, H2 = lm_head_weight.shape
    assert H == H2, "lm_head weight hidden dim mismatch"

    out_dtype = hidden_states.dtype
    M = B * S
    scale = float(H) ** -0.5

    cbytes = jnp.dtype(compute_dtype).itemsize
    obytes = jnp.dtype(out_dtype).itemsize

    # ---- tile selection ---------------------------------------------------
    if tm is None:
        tm = min(512, _round_up(M, 8))            # rows (sublane-aligned)
    if tn is None:
        tn = min(1024, _round_up(V, 128))         # vocab (lane-dense output)
    if tk is None:
        tk = H                                    # prefer a single reduction step

    def _need(tm_, tn_, tk_):
        n = 2 * (tm_ * tk_ * cbytes + tn_ * tk_ * cbytes + tm_ * tn_ * obytes)
        if tk_ < H and out_dtype != jnp.float32:
            n += tm_ * tn_ * 4                    # f32 accumulator scratch
        return n

    # Shrink tiles until the double-buffered working set fits the budget.
    while _need(tm, tn, tk) > _VMEM_WORKING_SET_BUDGET:
        if tn > 256:
            tn = max(256, _round_up(tn // 2, 128))
        elif tm > 128:
            tm = max(128, _round_up(tm // 2, 8))
        elif tk > 256:
            tk = max(256, _round_up(tk // 2, 128))
        else:
            break

    if tk >= H:
        tk = H
        H_pad = H
    else:
        H_pad = _round_up(H, tk)
    M_pad = _round_up(M, tm)
    V_pad = _round_up(V, tn)
    gm, gn, gk = M_pad // tm, V_pad // tn, H_pad // tk

    # ---- prepare operands (pad to tile multiples, cast to compute dtype) ---
    x = hidden_states.reshape(M, H)
    if (M_pad, H_pad) != (M, H):
        x = jnp.pad(x, ((0, M_pad - M), (0, H_pad - H)))
    x = x.astype(compute_dtype)

    w = lm_head_weight                            # [V, H] — no transpose
    if (V_pad, H_pad) != (V, H):
        w = jnp.pad(w, ((0, V_pad - V), (0, H_pad - H)))
    w = w.astype(compute_dtype)                   # in production, store W in bf16

    # ---- kernel variant ----------------------------------------------------
    if gk == 1:
        kernel = functools.partial(_lm_head_kernel_single_k, scale=scale)
        scratch_shapes = []
    elif out_dtype == jnp.float32:
        kernel = functools.partial(_lm_head_kernel_multi_k_inplace, scale=scale)
        scratch_shapes = []
    else:
        kernel = functools.partial(_lm_head_kernel_multi_k_scratch, scale=scale)
        scratch_shapes = [pltpu.VMEM((tm, tn), jnp.float32)]

    vmem_limit = int(min(max(int(_need(tm, tn, tk) * 1.3), 8 << 20),
                         _VMEM_LIMIT_CAP))

    cost = pl.CostEstimate(
        flops=2 * M_pad * V_pad * H_pad,
        transcendentals=0,
        bytes_accessed=(M_pad * H_pad * cbytes
                        + V_pad * H_pad * cbytes
                        + M_pad * V_pad * obytes),
    )

    out = pl.pallas_call(
        kernel,
        out_shape=jax.ShapeDtypeStruct((M_pad, V_pad), out_dtype),
        grid_spec=pltpu.PrefetchScalarGridSpec(
            num_scalar_prefetch=0,
            grid=(gm, gn, gk),
            in_specs=[
                pl.BlockSpec((tm, tk), lambda i, j, k: (i, k)),   # activations [M, H]
                pl.BlockSpec((tn, tk), lambda i, j, k: (j, k)),   # weight     [V, H]
            ],
            out_specs=pl.BlockSpec((tm, tn), lambda i, j, k: (i, j)),
            scratch_shapes=scratch_shapes,
        ),
        compiler_params=pltpu.CompilerParams(
            dimension_semantics=("parallel", "parallel", "arbitrary"),
            vmem_limit_bytes=vmem_limit,
        ),
        cost_estimate=cost,
    )(x, w)

    if (M_pad, V_pad) != (M, V):
        out = out[:M, :V]
    return out.reshape(B, S, V)


if __name__ == "__main__":
    # Small config consistent with the module: d_model = 32, vocab_size = 128.
    B, S, H, V = 2, 8, 32, 128

    key = jax.random.PRNGKey(0)
    k_x, k_w = jax.random.split(key, 2)

    hidden_states = jax.random.normal(k_x, (B, S, H), dtype=jnp.float32)
    # nn.Linear(d_model, vocab_size, bias=False).weight has shape [V, H].
    lm_head_weight = jax.random.normal(k_w, (V, H), dtype=jnp.float32) / jnp.sqrt(H)

    # Pure-JAX reference of the PyTorch forward.
    ref = (hidden_states * (H ** -0.5)) @ lm_head_weight.T

    # Default path: bf16 MXU inputs, f32 accumulate + f32 output.
    logits = switch_lm_prediction_head(hidden_states, lm_head_weight)
    jax.block_until_ready(logits)
    assert logits.shape == (B, S, V)
    assert jnp.allclose(logits, ref, atol=5e-2, rtol=5e-2), (
        float(jnp.max(jnp.abs(logits - ref))))

    # Opt-in f32 compute path: tight tolerance.
    logits_f32 = switch_lm_prediction_head(hidden_states, lm_head_weight,
                                           compute_dtype=jnp.float32)
    jax.block_until_ready(logits_f32)
    assert jnp.allclose(logits_f32, ref, atol=1e-5, rtol=1e-5), (
        float(jnp.max(jnp.abs(logits_f32 - ref))))

    # Odd shapes (exercise the padding path: M=10 -> 16 rows, V=100 -> 128 cols).
    B2, S2, H2, V2 = 2, 5, 32, 100
    hs2 = jax.random.normal(k_x, (B2, S2, H2), dtype=jnp.float32)
    w2 = jax.random.normal(k_w, (V2, H2), dtype=jnp.float32) / jnp.sqrt(H2)
    ref2 = (hs2 * (H2 ** -0.5)) @ w2.T
    out2 = switch_lm_prediction_head(hs2, w2, compute_dtype=jnp.float32)
    jax.block_until_ready(out2)
    assert out2.shape == (B2, S2, V2)
    assert jnp.allclose(out2, ref2, atol=1e-5, rtol=1e-5), (
        float(jnp.max(jnp.abs(out2 - ref2))))

    print("KERNEL_OK")
</pallas_src>

<mosaic_0001>
module attributes {stable_mosaic.version = 11 : i64} {
  func.func @_lm_head_kernel_single_k(%arg0: i32, %arg1: i32, %arg2: i32, %arg3: memref<16x32xbf16, #tpu.memory_space<vmem>>, %arg4: memref<128x32xbf16, #tpu.memory_space<vmem>>, %arg5: memref<16x128xf32, #tpu.memory_space<vmem>>) attributes {dimension_semantics = [#tpu.dimension_semantics<parallel>, #tpu.dimension_semantics<parallel>, #tpu.dimension_semantics<arbitrary>], iteration_bounds = array<i64: 1, 1, 1>, scalar_prefetch = 0 : i64, scratch_operands = 0 : i64, tpu.core_type = #tpu.core_type<tc>, window_params = [{transform_indices = @transform_0, window_bounds = array<i64: 16, 32>}, {transform_indices = @transform_1, window_bounds = array<i64: 128, 32>}, {transform_indices = @transform_2, window_bounds = array<i64: 16, 128>}]} {
    %c0 = arith.constant 0 : index
    %c0_0 = arith.constant 0 : index
    %0 = vector.load %arg3[%c0, %c0_0] : memref<16x32xbf16, #tpu.memory_space<vmem>>, vector<16x32xbf16>
    %c0_1 = arith.constant 0 : index
    %c0_2 = arith.constant 0 : index
    %1 = vector.load %arg4[%c0_1, %c0_2] : memref<128x32xbf16, #tpu.memory_space<vmem>>, vector<128x32xbf16>
    %cst = arith.constant dense<0.000000e+00> : vector<16x128xf32>
    %2 = tpu.matmul %0, %1, %cst {dimension_numbers = #tpu.dot_dimension_numbers<[1], [1], [0], [0], [0, 0, 1, 0], [], []>} : vector<16x32xbf16>, vector<128x32xbf16>, vector<16x128xf32> -> vector<16x128xf32>
    %cst_3 = arith.constant 0.176776692 : f32
    %3 = vector.broadcast %cst_3 : f32 to vector<16x128xf32>
    %4 = arith.mulf %2, %3 : vector<16x128xf32>
    %c0_4 = arith.constant 0 : index
    %c0_5 = arith.constant 0 : index
    %5 = vector.load %arg5[%c0_4, %c0_5] : memref<16x128xf32, #tpu.memory_space<vmem>>, vector<16x128xf32>
    tpu.vector_store %arg5[%c0_4, %c0_5], %4 {strides = array<i32>} : memref<16x128xf32, #tpu.memory_space<vmem>>, vector<16x128xf32>,
    return
  }
  func.func @transform_0(%arg0: i32, %arg1: i32, %arg2: i32) -> (i32, i32) {
    %c0_i32 = arith.constant 0 : i32
    return %arg0, %arg2 : i32, i32
  }
  func.func @transform_1(%arg0: i32, %arg1: i32, %arg2: i32) -> (i32, i32) {
    %c0_i32 = arith.constant 0 : i32
    return %arg1, %arg2 : i32, i32
  }
  func.func @transform_2(%arg0: i32, %arg1: i32, %arg2: i32) -> (i32, i32) {
    %c0_i32 = arith.constant 0 : i32
    return %arg0, %arg1 : i32, i32
  }
}

</mosaic_0001>

<llo_original>
// kernel: tpu_custom_call.1
$region0: #{tpu_custom_call.1}
  #allocation0 [shape = 'u32[]', space=smem, size = 0x4, offset = 0x4, fixed_abs, tag = 'smem constant byte address 0x4 - core index']
  #allocation1 [shape = 'u32[72,128]{1,0:T(1,128)}', space=vmem, size = 0x9000, scoped, tag = 'internal scratch']
  %s0 = inlined_call_operand.vmem [shape: bf16[16,32], index: 0, kind: input, shape index: {}]
  %s1 = inlined_call_operand.vmem [shape: bf16[128,32], index: 1, kind: input, shape index: {}]
  %s2 = inlined_call_operand.hbm [shape: f32[16,128], index: 2, kind: output, shape index: {}]
  %s3 = sld [smem:[#allocation0]]
  $region18: #{tpu_custom_call.1} parent=0
    _
  %s5 = ssub.s32 1, %s3
  %s6 = scalar_select 0, %s5, %s3
  $region1: #{tpu_custom_call.1} parent=0
    #allocation2 [shape = 'u8[8192]{0}', space=vmem, size = 0x2000, scoped, tag = 'output window, operand 0, single buffered']
    #allocation3 [shape = 's32[1]{0}', space=sflag, size = 0x4, scoped, tag = 'scoped memory for tpu_custom_call.1']
    %7 = vsyncpa [#allocation3], 0
    // Predicated region
    $region2: #{tpu_custom_call.1} parent=1 // pred_check
      _
    $region3: #{tpu_custom_call.1} parent=1 // pred_check_branch
      %9 = sbr.rel (0) target = $region5
    $region4: #{tpu_custom_call.1} parent=1 // pred_region
      _
    $region5: #{tpu_custom_call.1} parent=1 // pred_fallthru
      _
    // Predicated region
    $region6: #{tpu_custom_call.1} parent=1 // pred_check
      _
    $region7: #{tpu_custom_call.1} parent=1 // pred_check_branch
      %11 = sbr.rel (0) target = $region9
    $region8: #{tpu_custom_call.1} parent=1 // pred_region
      _
    $region9: #{tpu_custom_call.1} parent=1 // pred_fallthru
      _
    %v12 = vld [vmem:[%s0] sm:$0xf]
    %v13 = vld [vmem:[%s0 + $0x4] sm:$0xf]
    %v14 = vld [vmem:[%s1] sm:$0xf]
    %v15 = vld [vmem:[%s1 + $0x4] sm:$0xf]
    %v16 = vld [vmem:[%s1 + $0x8] sm:$0xf]
    %v17 = vld [vmem:[%s1 + $0xc] sm:$0xf]
    %v18 = vld [vmem:[%s1 + $0x10] sm:$0xf]
    %v19 = vld [vmem:[%s1 + $0x14] sm:$0xf]
    %v20 = vld [vmem:[%s1 + $0x18] sm:$0xf]
    %v21 = vld [vmem:[%s1 + $0x1c] sm:$0xf]
    %v22 = vld [vmem:[%s1 + $0x20] sm:$0xf]
    %v23 = vld [vmem:[%s1 + $0x24] sm:$0xf]
    %v24 = vld [vmem:[%s1 + $0x28] sm:$0xf]
    %v25 = vld [vmem:[%s1 + $0x2c] sm:$0xf]
    %v26 = vld [vmem:[%s1 + $0x30] sm:$0xf]
    %v27 = vld [vmem:[%s1 + $0x34] sm:$0xf]
    %v28 = vld [vmem:[%s1 + $0x38] sm:$0xf]
    %v29 = vld [vmem:[%s1 + $0x3c] sm:$0xf]
    %v32 = vunpack.c.l.b16 %v12
    %v33 = vunpack.c.l.b16 %v13
    %v34 = vpack.c.b16 %v33, %v32
    %v51 = vunpack.c.l.b16 %v14
    %v52 = vunpack.c.l.b16 %v15
    %v53 = vunpack.c.l.b16 %v16
    %v54 = vunpack.c.l.b16 %v17
    %v55 = vunpack.c.l.b16 %v18
    %v56 = vunpack.c.l.b16 %v19
    %v57 = vunpack.c.l.b16 %v20
    %v58 = vunpack.c.l.b16 %v21
    %v59 = vunpack.c.l.b16 %v22
    %v60 = vunpack.c.l.b16 %v23
    %v61 = vunpack.c.l.b16 %v24
    %v62 = vunpack.c.l.b16 %v25
    %v63 = vunpack.c.l.b16 %v26
    %v64 = vunpack.c.l.b16 %v27
    %v65 = vunpack.c.l.b16 %v28
    %v66 = vunpack.c.l.b16 %v29
    %v67 = vpack.c.b16 %v52, %v51
    %v68 = vpack.c.b16 %v54, %v53
    %v69 = vpack.c.b16 %v56, %v55
    %v70 = vpack.c.b16 %v58, %v57
    %v71 = vpack.c.b16 %v60, %v59
    %v72 = vpack.c.b16 %v62, %v61
    %v73 = vpack.c.b16 %v64, %v63
    %v74 = vpack.c.b16 %v66, %v65
    %vm75 = vcmask 261120
    %v77 = vsel %vm75, %v34, 0
    %v80 = vsel %vm75, %v67, 0
    %v83 = vsel %vm75, %v68, 0
    %v86 = vsel %vm75, %v69, 0
    %v89 = vsel %vm75, %v70, 0
    %v92 = vsel %vm75, %v71, 0
    %v95 = vsel %vm75, %v72, 0
    %v98 = vsel %vm75, %v73, 0
    %v101 = vsel %vm75, %v74, 0
    %103 = vmatpush.bf16.xpose.msra.mxu0 %v101
    %104 = vmatpush.bf16.xpose.msra.mxu0 %v98
    %105 = vmatpush.bf16.xpose.msra.mxu0 %v95
    %106 = vmatpush.bf16.xpose.msra.mxu0 %v92
    %107 = vmatpush.bf16.xpose.msra.mxu0 %v89
    %108 = vmatpush.bf16.xpose.msra.mxu0 %v86
    %109 = vmatpush.bf16.xpose.msra.mxu0 %v83
    %110 = vmatpush.bf16.xpose.msra.mxu0 %v80
    %111 = vmatmul.bf16.gmra.mxu0 %v77
    %v112 = vpop.f32.mrf.mxu0
    %v113 = vadd.f32 0.0, %v112
    %v114 = vpop.f32.mrf.mxu0
    %v115 = vadd.f32 0.0, %v114
    %116 = vdwg.mxu0
    %v117 = vmul.f32 %v113, 0.17677669
    %v118 = vmul.f32 %v115, 0.17677669
    %119 = vst [vmem:[#allocation2] sm:$0xff] %v117
    %120 = vst [vmem:[#allocation2 + $0x8] sm:$0xff] %v118
    // Predicated region
    $region10: #{tpu_custom_call.1} parent=1 // pred_check
      _
    $region11: #{tpu_custom_call.1} parent=1 // pred_check_branch
      %122 = sbr.rel (0) target = $region13
    $region12: #{tpu_custom_call.1} parent=1 // pred_region
      %124 = vsyncadd [#allocation3], 0
      %s125 = sshll.u32 [#allocation2], 4
      %s126 = int_to_ptr.vmem [resolvable:$true] %s125
      %s127 = sshll.u32 %s2, 4
      %s128 = int_to_ptr.hbm [resolvable:$true] %s127
      %133 = dma.vmem_to_hbm [thread:$0]  %s126, 256, %s128, [#allocation3], 128, 128, 8
    $region13: #{tpu_custom_call.1} parent=1 // pred_fallthru
      _
    // Predicated region
    $region14: #{tpu_custom_call.1} parent=1 // pred_check
      _
    $region15: #{tpu_custom_call.1} parent=1 // pred_check_branch
      %135 = sbr.rel (0) target = $region17
    $region16: #{tpu_custom_call.1} parent=1 // pred_region
      %137 = dma.done [#allocation3], 256
    $region17: #{tpu_custom_call.1} parent=1 // pred_fallthru
      _
    %138 = vsyncpa [#allocation3], 1

</llo_original>
